<compile_context>
chip_gen: v5e
topology: v5e:2x2
jax: 0.10.0
libtpu: 0.0.40
codegen_flags: <defaults>
</compile_context>

<pallas_src>
import functools

import jax
import jax.numpy as jnp
from jax.experimental import pallas as pl
from jax.experimental.pallas import tpu as pltpu


# ------------------- generic tiled matmul (+bias / BN / ReLU) ---------------

def _matmul_kernel(*refs, has_scale, relu):
    if has_scale:
        x_ref, w_ref, scale_ref, shift_ref, o_ref, acc_ref = refs
    else:
        x_ref, w_ref, shift_ref, o_ref, acc_ref = refs
        scale_ref = None
    k = pl.program_id(2)

    @pl.when(k == 0)
    def _():
        acc_ref[...] = jnp.zeros_like(acc_ref)

    acc_ref[...] += jnp.dot(x_ref[...], w_ref[...],
                            preferred_element_type=jnp.float32)

    @pl.when(k == pl.num_programs(2) - 1)
    def _():
        acc = acc_ref[...]
        if has_scale:
            acc = acc * scale_ref[...]
        acc = acc + shift_ref[...]
        if relu:
            acc = jnp.maximum(acc, 0.0)
        o_ref[...] = acc.astype(o_ref.dtype)


def _pick_tile(dim, candidates):
    # largest candidate that divides the dim; otherwise the full extent (always legal,
    # and small for every dim this module produces).
    for c in candidates:
        if c <= dim and dim % c == 0:
            return c
    return dim


def matmul_bias_act(x, w, shift, scale=None, relu=False, out_dtype=jnp.bfloat16):
    """out = relu?( (x @ w) * scale + shift ).  bf16 MXU inputs, f32 accumulation."""
    M, K = x.shape
    N = w.shape[1]
    tm = _pick_tile(M, (512, 256, 128, 64))
    tn = _pick_tile(N, (512, 256, 128))
    tk = _pick_tile(K, (512, 256, 128))
    grid = (M // tm, N // tn, K // tk)

    in_specs = [pl.BlockSpec((tm, tk), lambda i, j, k: (i, k)),
                pl.BlockSpec((tk, tn), lambda i, j, k: (k, j))]
    args = [x.astype(jnp.bfloat16), w.astype(jnp.bfloat16)]
    if scale is not None:
        in_specs.append(pl.BlockSpec((1, tn), lambda i, j, k: (0, j)))
        args.append(scale.reshape(1, N).astype(jnp.float32))
    in_specs.append(pl.BlockSpec((1, tn), lambda i, j, k: (0, j)))
    args.append(shift.reshape(1, N).astype(jnp.float32))

    cost = pl.CostEstimate(
        flops=2 * M * N * K, transcendentals=0,
        bytes_accessed=2 * (M * K + K * N) + M * N * jnp.dtype(out_dtype).itemsize)

    return pl.pallas_call(
        functools.partial(_matmul_kernel, has_scale=scale is not None, relu=relu),
        out_shape=jax.ShapeDtypeStruct((M, N), out_dtype),
        grid=grid,
        in_specs=in_specs,
        out_specs=pl.BlockSpec((tm, tn), lambda i, j, k: (i, j)),
        scratch_shapes=[pltpu.VMEM((tm, tn), jnp.float32)],
        compiler_params=pltpu.CompilerParams(
            dimension_semantics=("parallel", "parallel", "arbitrary"),
            vmem_limit_bytes=32 * 1024 * 1024),
        cost_estimate=cost,
    )(*args)


# -------------------- 3x3 conv + BN + ReLU (no HBM im2col) ------------------

def _conv3x3_kernel(x_ref, w_ref, scale_ref, shift_ref, *rest, offsets, relu, has_res):
    # x_ref: (1, (H+3)*(W+2), Cin) padded channels-last rows, resident in VMEM.
    # For each of the 9 taps we matmul a shifted row-window against that tap's
    # (Cin, Cout) weight and accumulate in f32 -- the im2col never exists in HBM.
    if has_res:
        res_ref, o_ref = rest
    else:
        (o_ref,) = rest
    n_rows, cout = o_ref.shape[1], o_ref.shape[2]
    acc = jnp.zeros((n_rows, cout), jnp.float32)
    for t, off in enumerate(offsets):                 # static, unrolled (9 taps)
        rows = x_ref[0, off:off + n_rows, :]
        acc = acc + jnp.dot(rows, w_ref[t], preferred_element_type=jnp.float32)
    acc = acc * scale_ref[...] + shift_ref[...]       # fused eval-mode BN
    if relu:
        acc = jnp.maximum(acc, 0.0)
    if has_res:
        acc = acc + res_ref[0].astype(jnp.float32)    # fused residual (sa_conv + sc_conv)
    o_ref[0] = acc.astype(o_ref.dtype)


def _dual_conv3x3_kernel(x_ref, w1_ref, w2_ref, s1_ref, b1_ref, s2_ref, b2_ref,
                         o1_ref, o2_ref, *, offsets):
    # conv5a + conv5c fused: both branches read the same padded activation, which is
    # DMAd into VMEM once per batch; per tap, one row-window load feeds two matmuls.
    n_rows, c1 = o1_ref.shape[1], o1_ref.shape[2]
    c2 = o2_ref.shape[2]
    acc1 = jnp.zeros((n_rows, c1), jnp.float32)
    acc2 = jnp.zeros((n_rows, c2), jnp.float32)
    for t, off in enumerate(offsets):                 # static, unrolled (9 taps)
        rows = x_ref[0, off:off + n_rows, :]
        acc1 = acc1 + jnp.dot(rows, w1_ref[t], preferred_element_type=jnp.float32)
        acc2 = acc2 + jnp.dot(rows, w2_ref[t], preferred_element_type=jnp.float32)
    o1_ref[0] = jnp.maximum(acc1 * s1_ref[...] + b1_ref[...], 0.0).astype(o1_ref.dtype)
    o2_ref[0] = jnp.maximum(acc2 * s2_ref[...] + b2_ref[...], 0.0).astype(o2_ref.dtype)


def _pad_rows(x_rows, H, W):
    """(B, H*W, C) -> (B, (H+3)*(W+2), C): pad=1 spatially + one extra bottom row so
    every shifted window of length H*(W+2) stays in bounds."""
    B, _, C = x_rows.shape
    xm = x_rows.reshape(B, H, W, C)
    xm = jnp.pad(xm, ((0, 0), (1, 2), (1, 1), (0, 0)))
    return xm.reshape(B, (H + 3) * (W + 2), C)


def _strip_pad(y_padded, H, W):
    """(B, H*(W+2), C) padded-width conv output -> (B, H*W, C)."""
    B, _, C = y_padded.shape
    return y_padded.reshape(B, H, W + 2, C)[:, :, :W, :].reshape(B, H * W, C)


def _taps(w):
    """PyTorch (Cout, Cin, 3, 3) conv weight -> (9, Cin, Cout) per-tap matrices."""
    cout, cin = w.shape[0], w.shape[1]
    return w.transpose(2, 3, 1, 0).reshape(9, cin, cout).astype(jnp.bfloat16)


def conv3x3_bn_relu(xp_rows, w, scale, shift, *, H, W, residual=None):
    """3x3 conv (stride 1, pad 1, no bias) + BN + ReLU on channels-last rows.

    xp_rows: output of _pad_rows.  w: (Cout, Cin, 3, 3) PyTorch layout.
    Returns padded-width rows (B, H*(W+2), Cout); strip with _strip_pad.
    """
    B, Pp, Cin = xp_rows.shape
    Cout = w.shape[0]
    n_rows = H * (W + 2)
    offsets = tuple(ky * (W + 2) + kx for ky in range(3) for kx in range(3))

    in_specs = [pl.BlockSpec((1, Pp, Cin), lambda b: (b, 0, 0)),
                pl.BlockSpec((9, Cin, Cout), lambda b: (0, 0, 0)),
                pl.BlockSpec((1, Cout), lambda b: (0, 0)),
                pl.BlockSpec((1, Cout), lambda b: (0, 0))]
    args = [xp_rows.astype(jnp.bfloat16), _taps(w),
            scale.reshape(1, Cout).astype(jnp.float32),
            shift.reshape(1, Cout).astype(jnp.float32)]
    if residual is not None:
        in_specs.append(pl.BlockSpec((1, n_rows, Cout), lambda b: (b, 0, 0)))
        args.append(residual)

    return pl.pallas_call(
        functools.partial(_conv3x3_kernel, offsets=offsets, relu=True,
                          has_res=residual is not None),
        out_shape=jax.ShapeDtypeStruct((B, n_rows, Cout), jnp.bfloat16),
        grid=(B,),
        in_specs=in_specs,
        out_specs=pl.BlockSpec((1, n_rows, Cout), lambda b: (b, 0, 0)),
        compiler_params=pltpu.CompilerParams(dimension_semantics=("parallel",)),
    )(*args)


def dual_conv3x3_bn_relu(xp_rows, w1, s1, b1, w2, s2, b2, *, H, W):
    """conv5a / conv5c fused: one read of the padded input, two (BN+ReLU) outputs."""
    B, Pp, Cin = xp_rows.shape
    C1, C2 = w1.shape[0], w2.shape[0]
    n_rows = H * (W + 2)
    offsets = tuple(ky * (W + 2) + kx for ky in range(3) for kx in range(3))

    return pl.pallas_call(
        functools.partial(_dual_conv3x3_kernel, offsets=offsets),
        out_shape=(jax.ShapeDtypeStruct((B, n_rows, C1), jnp.bfloat16),
                   jax.ShapeDtypeStruct((B, n_rows, C2), jnp.bfloat16)),
        grid=(B,),
        in_specs=[pl.BlockSpec((1, Pp, Cin), lambda b: (b, 0, 0)),
                  pl.BlockSpec((9, Cin, C1), lambda b: (0, 0, 0)),
                  pl.BlockSpec((9, Cin, C2), lambda b: (0, 0, 0)),
                  pl.BlockSpec((1, C1), lambda b: (0, 0)),
                  pl.BlockSpec((1, C1), lambda b: (0, 0)),
                  pl.BlockSpec((1, C2), lambda b: (0, 0)),
                  pl.BlockSpec((1, C2), lambda b: (0, 0))],
        out_specs=(pl.BlockSpec((1, n_rows, C1), lambda b: (b, 0, 0)),
                   pl.BlockSpec((1, n_rows, C2), lambda b: (b, 0, 0))),
        compiler_params=pltpu.CompilerParams(dimension_semantics=("parallel",)),
    )(xp_rows.astype(jnp.bfloat16), _taps(w1), _taps(w2),
      s1.reshape(1, C1).astype(jnp.float32), b1.reshape(1, C1).astype(jnp.float32),
      s2.reshape(1, C2).astype(jnp.float32), b2.reshape(1, C2).astype(jnp.float32))


# ------------------------- PAM / CAM attention kernels ----------------------

def _pam_kernel(x_ref, wq_ref, wk_ref, wv_ref, bq_ref, bk_ref, bv_ref, gamma_ref, o_ref):
    # Position Attention Module with the q/k/v 1x1 projections fused in
    # (per batch, channels-last x: (HW, Ci)):
    #   q = x Wq + bq ; k = x Wk + bk ; v = x Wv + bv
    #   energy = q k^T ; attn = softmax(energy) ; out = attn v ; gamma*out + x
    x = x_ref[0]                                                       # (HW, Ci) bf16
    q = jnp.dot(x, wq_ref[...], preferred_element_type=jnp.float32) + bq_ref[...]
    k = jnp.dot(x, wk_ref[...], preferred_element_type=jnp.float32) + bk_ref[...]
    v = jnp.dot(x, wv_ref[...], preferred_element_type=jnp.float32) + bv_ref[...]
    energy = jax.lax.dot_general(q.astype(jnp.bfloat16), k.astype(jnp.bfloat16),
                                 (((1,), (1,)), ((), ())),
                                 preferred_element_type=jnp.float32)   # (HW, HW)
    energy = energy - jnp.max(energy, axis=-1, keepdims=True)
    p = jnp.exp(energy)
    attn = p * pl.reciprocal(jnp.sum(p, axis=-1, keepdims=True), approx=True)
    out = jnp.dot(attn.astype(jnp.bfloat16), v.astype(jnp.bfloat16),
                  preferred_element_type=jnp.float32)                  # (HW, Ci)
    o_ref[0] = (gamma_ref[...] * out + x.astype(jnp.float32)).astype(o_ref.dtype)


def pam_attention(feat1, wq, bq, wk, bk, wv, bv, gamma):
    B, HW, Ci = feat1.shape
    Cq = wq.shape[1]
    return pl.pallas_call(
        _pam_kernel,
        out_shape=jax.ShapeDtypeStruct((B, HW, Ci), jnp.bfloat16),
        grid=(B,),
        in_specs=[pl.BlockSpec((1, HW, Ci), lambda b: (b, 0, 0)),
                  pl.BlockSpec((Ci, Cq), lambda b: (0, 0)),
                  pl.BlockSpec((Ci, Cq), lambda b: (0, 0)),
                  pl.BlockSpec((Ci, Ci), lambda b: (0, 0)),
                  pl.BlockSpec((1, Cq), lambda b: (0, 0)),
                  pl.BlockSpec((1, Cq), lambda b: (0, 0)),
                  pl.BlockSpec((1, Ci), lambda b: (0, 0)),
                  pl.BlockSpec((1, 1), lambda b: (0, 0))],
        out_specs=pl.BlockSpec((1, HW, Ci), lambda b: (b, 0, 0)),
        compiler_params=pltpu.CompilerParams(dimension_semantics=("parallel",)),
    )(feat1, wq.astype(jnp.bfloat16), wk.astype(jnp.bfloat16), wv.astype(jnp.bfloat16),
      bq.reshape(1, Cq).astype(jnp.float32), bk.reshape(1, Cq).astype(jnp.float32),
      bv.reshape(1, Ci).astype(jnp.float32), gamma.reshape(1, 1).astype(jnp.float32))


def _cam_kernel(x_ref, gamma_ref, o_ref):
    # Channel Attention Module (per batch, channels-last x: (HW, C)):
    #   energy = X^T X ; softmax(rowmax - energy) == exp(rowmin - energy)/sum (one reduce)
    x = x_ref[0]
    energy = jax.lax.dot_general(x, x, (((0,), (0,)), ((), ())),
                                 preferred_element_type=jnp.float32)   # (C, C)
    p = jnp.exp(jnp.min(energy, axis=-1, keepdims=True) - energy)
    attn = p * pl.reciprocal(jnp.sum(p, axis=-1, keepdims=True), approx=True)
    out = jax.lax.dot_general(x, attn.astype(x.dtype), (((1,), (1,)), ((), ())),
                              preferred_element_type=jnp.float32)      # (HW, C)
    o_ref[0] = (gamma_ref[...] * out + x.astype(jnp.float32)).astype(o_ref.dtype)


def cam_attention(x, gamma):
    B, HW, C = x.shape
    return pl.pallas_call(
        _cam_kernel,
        out_shape=jax.ShapeDtypeStruct((B, HW, C), jnp.bfloat16),
        grid=(B,),
        in_specs=[pl.BlockSpec((1, HW, C), lambda b: (b, 0, 0)),
                  pl.BlockSpec((1, 1), lambda b: (0, 0))],
        out_specs=pl.BlockSpec((1, HW, C), lambda b: (b, 0, 0)),
        compiler_params=pltpu.CompilerParams(dimension_semantics=("parallel",)),
    )(x, gamma.reshape(1, 1).astype(jnp.float32))


# --------------- final 1x1 conv (conv8) + bias + position embeddings --------

def _tokens_kernel(x_ref, w_ref, posb_ref, o_ref):
    acc = jnp.dot(x_ref[0], w_ref[...], preferred_element_type=jnp.float32)
    o_ref[0] = acc + posb_ref[...]          # conv8 bias + pos_emb fused in posb


def tokens_proj(feat, w8, pos_plus_bias):
    B, HW, Ci = feat.shape
    hidden = w8.shape[1]
    return pl.pallas_call(
        _tokens_kernel,
        out_shape=jax.ShapeDtypeStruct((B, HW, hidden), jnp.float32),
        grid=(B,),
        in_specs=[pl.BlockSpec((1, HW, Ci), lambda b: (b, 0, 0)),
                  pl.BlockSpec((Ci, hidden), lambda b: (0, 0)),
                  pl.BlockSpec((HW, hidden), lambda b: (0, 0))],
        out_specs=pl.BlockSpec((1, HW, hidden), lambda b: (b, 0, 0)),
        compiler_params=pltpu.CompilerParams(dimension_semantics=("parallel",)),
    )(feat, w8, pos_plus_bias)


# ------------------------------- model glue ---------------------------------

def danet_head_forward(x_tokens, H, W, p):
    """DANetHead on channels-last tokens (B, H*W, C) -> fused feature (B, H*W, inter)."""
    xp = _pad_rows(x_tokens, H, W)

    # conv5a + conv5c share the padded input -> single dual-output kernel.
    feat1_p, feat2_p = dual_conv3x3_bn_relu(
        xp, p['conv5a_w'], p['conv5a_scale'], p['conv5a_shift'],
        p['conv5c_w'], p['conv5c_scale'], p['conv5c_shift'], H=H, W=W)
    feat1 = _strip_pad(feat1_p, H, W)
    feat2 = _strip_pad(feat2_p, H, W)

    # position-attention branch: q/k/v projection fused into the attention kernel.
    sa = pam_attention(feat1,
                       p['pam_q_w'].T, p['pam_q_b'],
                       p['pam_k_w'].T, p['pam_k_b'],
                       p['pam_v_w'].T, p['pam_v_b'],
                       p['pam_gamma'])                                  # (B, HW, inter)
    sa_conv_p = conv3x3_bn_relu(_pad_rows(sa, H, W), p['conv51_w'],
                                p['conv51_scale'], p['conv51_shift'], H=H, W=W)

    # channel-attention branch
    sc = cam_attention(feat2, p['cam_gamma'])                           # (B, HW, inter)
    # conv52 with sa_conv added in its epilogue (feat_sum = sa_conv + sc_conv)
    feat_sum_p = conv3x3_bn_relu(_pad_rows(sc, H, W), p['conv52_w'],
                                 p['conv52_scale'], p['conv52_shift'], H=H, W=W,
                                 residual=sa_conv_p)
    return _strip_pad(feat_sum_p, H, W)                                 # (B, HW, inter)


def embeddings_forward(x, params):
    """x: (B, Cin, H, W) NCHW -> (embeddings (B, n_patches, hidden) f32, features=None)."""
    B, Cin, H, W = x.shape
    ps = params['patch_size']
    hidden = params['patch_w'].shape[0]
    Hp, Wp = H // ps, W // ps
    n_patches = Hp * Wp

    # patch_embeddings: Conv2d(kernel=stride=patch_size) == tiled matmul over flattened
    # patches; output is already channels-last and stays that way for the whole head.
    patches = (x.reshape(B, Cin, Hp, ps, Wp, ps)
                 .transpose(0, 2, 4, 1, 3, 5)
                 .reshape(B * n_patches, Cin * ps * ps))
    wmat = params['patch_w'].reshape(hidden, Cin * ps * ps).T
    emb = matmul_bias_act(patches, wmat, params['patch_b'], out_dtype=jnp.bfloat16)
    emb = emb.reshape(B, n_patches, hidden)

    feat = danet_head_forward(emb, Hp, Wp, params['danet'])     # (B, n_patches, inter)

    # conv8 (1x1) + its bias + position embeddings fused into one kernel;
    # output is already x.flatten(2).transpose(-1,-2) token layout.
    d = params['danet']
    pos_plus_bias = (params['pos_emb'][0] + d['conv8_b'][None, :]).astype(jnp.float32)
    tokens = tokens_proj(feat, d['conv8_w'].T.astype(jnp.bfloat16), pos_plus_bias)
    # TODO(synk): Dropout / Dropout2d treated as identity (eval mode); no RNG dropout in kernel.
    return tokens, None  # non-hybrid path: features = None


# --------------------------- deterministic params ---------------------------

def init_params(key, in_channels, hidden, patch_size, n_patches):
    keys = iter(jax.random.split(key, 32))

    def nrm(shape, scale=0.02):
        return scale * jax.random.normal(next(keys), shape, jnp.float32)

    def bn(c):
        gamma = 1.0 + 0.1 * jax.random.normal(next(keys), (c,), jnp.float32)
        beta = 0.1 * jax.random.normal(next(keys), (c,), jnp.float32)
        mean = jnp.zeros((c,), jnp.float32)
        var = jnp.ones((c,), jnp.float32)
        scale = gamma / jnp.sqrt(var + 1e-5)
        shift = beta - mean * scale
        return scale, shift

    inter = hidden // 4
    cq = max(inter // 8, 1)
    danet = {}
    for name, (cout, cin) in [('conv5a', (inter, hidden)), ('conv5c', (inter, hidden)),
                              ('conv51', (inter, inter)), ('conv52', (inter, inter))]:
        danet[name + '_w'] = nrm((cout, cin, 3, 3))
        s, sh = bn(cout)
        danet[name + '_scale'], danet[name + '_shift'] = s, sh
    danet['pam_q_w'], danet['pam_q_b'] = nrm((cq, inter)), nrm((cq,))
    danet['pam_k_w'], danet['pam_k_b'] = nrm((cq, inter)), nrm((cq,))
    danet['pam_v_w'], danet['pam_v_b'] = nrm((inter, inter)), nrm((inter,))
    # PyTorch inits the attention gammas to 0; use a nonzero deterministic value
    # so the attention path actually contributes in this synthetic test.
    danet['pam_gamma'] = jnp.array(0.1, jnp.float32)
    danet['cam_gamma'] = jnp.array(0.1, jnp.float32)
    danet['conv8_w'], danet['conv8_b'] = nrm((hidden, inter)), nrm((hidden,))

    return {
        'patch_size': patch_size,
        'patch_w': nrm((hidden, in_channels, patch_size, patch_size)),
        'patch_b': nrm((hidden,)),
        'pos_emb': nrm((1, n_patches, hidden)),
        'danet': danet,
    }


if __name__ == "__main__":
    B, Cin, H, W = 2, 4, 16, 16
    patch_size = 4
    hidden = 64
    n_patches = (H // patch_size) * (W // patch_size)

    key = jax.random.PRNGKey(0)
    kx, kp = jax.random.split(key)
    x = jax.random.normal(kx, (B, Cin, H, W), jnp.float32)
    params = init_params(kp, Cin, hidden, patch_size, n_patches)

    embeddings, features = embeddings_forward(x, params)
    embeddings = jax.block_until_ready(embeddings)

    assert embeddings.shape == (B, n_patches, hidden), embeddings.shape
    assert features is None
    assert bool(jnp.all(jnp.isfinite(embeddings)))
    print("KERNEL_OK")
</pallas_src>

<mosaic_0001>
module attributes {stable_mosaic.version = 11 : i64} {
  func.func @_matmul_kernel(%arg0: i32, %arg1: i32, %arg2: i32, %arg3: memref<32x64xbf16, #tpu.memory_space<vmem>>, %arg4: memref<64x64xbf16, #tpu.memory_space<vmem>>, %arg5: memref<1x64xf32, #tpu.memory_space<vmem>>, %arg6: memref<32x64xbf16, #tpu.memory_space<vmem>>, %arg7: memref<32x64xf32, #tpu.memory_space<vmem>>) attributes {dimension_semantics = [#tpu.dimension_semantics<parallel>, #tpu.dimension_semantics<parallel>, #tpu.dimension_semantics<arbitrary>], iteration_bounds = array<i64: 1, 1, 1>, scalar_prefetch = 0 : i64, scratch_operands = 1 : i64, tpu.core_type = #tpu.core_type<tc>, window_params = [{transform_indices = @transform_0, window_bounds = array<i64: 32, 64>}, {transform_indices = @transform_1, window_bounds = array<i64: 64, 64>}, {transform_indices = @transform_2, window_bounds = array<i64: 1, 64>}, {transform_indices = @transform_3, window_bounds = array<i64: 32, 64>}]} {
    %c0_i32 = arith.constant 0 : i32
    %0 = arith.cmpi eq, %arg2, %c0_i32 : i32
    %1 = arith.extui %0 : i1 to i32
    %c0_i32_0 = arith.constant 0 : i32
    %2 = arith.cmpi ne, %1, %c0_i32_0 : i32
    scf.if %2 {
      %cst_10 = arith.constant 0.000000e+00 : f32
      %12 = vector.broadcast %cst_10 : f32 to vector<32x64xf32>
      %c0_11 = arith.constant 0 : index
      %c0_12 = arith.constant 0 : index
      %13 = vector.load %arg7[%c0_11, %c0_12] : memref<32x64xf32, #tpu.memory_space<vmem>>, vector<32x64xf32>
      tpu.vector_store %arg7[%c0_11, %c0_12], %12 {strides = array<i32>} : memref<32x64xf32, #tpu.memory_space<vmem>>, vector<32x64xf32>,
    } else {
    }
    %c0 = arith.constant 0 : index
    %c0_1 = arith.constant 0 : index
    %3 = vector.load %arg7[%c0, %c0_1] : memref<32x64xf32, #tpu.memory_space<vmem>>, vector<32x64xf32>
    %c0_2 = arith.constant 0 : index
    %c0_3 = arith.constant 0 : index
    %4 = vector.load %arg3[%c0_2, %c0_3] : memref<32x64xbf16, #tpu.memory_space<vmem>>, vector<32x64xbf16>
    %c0_4 = arith.constant 0 : index
    %c0_5 = arith.constant 0 : index
    %5 = vector.load %arg4[%c0_4, %c0_5] : memref<64x64xbf16, #tpu.memory_space<vmem>>, vector<64x64xbf16>
    %cst = arith.constant dense<0.000000e+00> : vector<32x64xf32>
    %6 = tpu.matmul %4, %5, %cst {dimension_numbers = #tpu.dot_dimension_numbers<[1], [0], [0], [1], [0, 0, 1, 1], [], []>} : vector<32x64xbf16>, vector<64x64xbf16>, vector<32x64xf32> -> vector<32x64xf32>
    %7 = arith.addf %3, %6 : vector<32x64xf32>
    %c0_6 = arith.constant 0 : index
    %c0_7 = arith.constant 0 : index
    %8 = vector.load %arg7[%c0_6, %c0_7] : memref<32x64xf32, #tpu.memory_space<vmem>>, vector<32x64xf32>
    tpu.vector_store %arg7[%c0_6, %c0_7], %7 {strides = array<i32>} : memref<32x64xf32, #tpu.memory_space<vmem>>, vector<32x64xf32>,
    %c0_i32_8 = arith.constant 0 : i32
    %9 = arith.cmpi eq, %arg2, %c0_i32_8 : i32
    %10 = arith.extui %9 : i1 to i32
    %c0_i32_9 = arith.constant 0 : i32
    %11 = arith.cmpi ne, %10, %c0_i32_9 : i32
    scf.if %11 {
      %c0_10 = arith.constant 0 : index
      %c0_11 = arith.constant 0 : index
      %12 = vector.load %arg7[%c0_10, %c0_11] : memref<32x64xf32, #tpu.memory_space<vmem>>, vector<32x64xf32>
      %c0_12 = arith.constant 0 : index
      %c0_13 = arith.constant 0 : index
      %13 = vector.load %arg5[%c0_12, %c0_13] : memref<1x64xf32, #tpu.memory_space<vmem>>, vector<1x64xf32>
      %14 = vector.broadcast %13 : vector<1x64xf32> to vector<32x64xf32>
      %15 = arith.addf %12, %14 : vector<32x64xf32>
      %16 = arith.truncf %15 : vector<32x64xf32> to vector<32x64xbf16>
      %c0_14 = arith.constant 0 : index
      %c0_15 = arith.constant 0 : index
      %17 = vector.load %arg6[%c0_14, %c0_15] : memref<32x64xbf16, #tpu.memory_space<vmem>>, vector<32x64xbf16>
      tpu.vector_store %arg6[%c0_14, %c0_15], %16 {strides = array<i32>} : memref<32x64xbf16, #tpu.memory_space<vmem>>, vector<32x64xbf16>,
    } else {
    }
    return
  }
  func.func @transform_0(%arg0: i32, %arg1: i32, %arg2: i32) -> (i32, i32) {
    %c0_i32 = arith.constant 0 : i32
    return %arg0, %arg2 : i32, i32
  }
  func.func @transform_1(%arg0: i32, %arg1: i32, %arg2: i32) -> (i32, i32) {
    %c0_i32 = arith.constant 0 : i32
    return %arg2, %arg1 : i32, i32
  }
  func.func @transform_2(%arg0: i32, %arg1: i32, %arg2: i32) -> (i32, i32) {
    %c0_i32 = arith.constant 0 : i32
    %c0_i32_0 = arith.constant 0 : i32
    return %c0_i32, %arg1 : i32, i32
  }
  func.func @transform_3(%arg0: i32, %arg1: i32, %arg2: i32) -> (i32, i32) {
    %c0_i32 = arith.constant 0 : i32
    return %arg0, %arg1 : i32, i32
  }
}

</mosaic_0001>

<llo_original>
// kernel: tpu_custom_call.1
$region0: #{tpu_custom_call.1}
  #allocation0 [shape = 'u32[]', space=smem, size = 0x4, offset = 0x4, fixed_abs, tag = 'smem constant byte address 0x4 - core index']
  #allocation1 [shape = 'u32[72,128]{1,0:T(1,128)}', space=vmem, size = 0x9000, scoped, tag = 'internal scratch']
  #allocation2 [shape = 'f32[32,64]{1,0:T(8,128)}', space=vmem, size = 0x4000, scoped, tag = 'scratch operand']
  %s0 = inlined_call_operand.hbm [shape: bf16[32,64], index: 0, kind: input, shape index: {}]
  %s1 = inlined_call_operand.hbm [shape: bf16[64,64], index: 1, kind: input, shape index: {}]
  %s2 = inlined_call_operand.vmem [shape: f32[1,64], index: 2, kind: input, shape index: {}]
  %s3 = inlined_call_operand.hbm [shape: bf16[32,64], index: 3, kind: output, shape index: {}]
  %s4 = sld [smem:[#allocation0]]
  $region38: #{tpu_custom_call.1} parent=0
    _
  %s6 = ssub.s32 1, %s4
  %s7 = scalar_select 0, %s6, %s4
  $region1: #{tpu_custom_call.1} parent=0
    #allocation3 [shape = 'u8[8192]{0}', space=vmem, size = 0x2000, scoped, tag = 'input window, operand 0, single buffered']
    #allocation4 [shape = 's32[1]{0}', space=sflag, size = 0x4, scoped, tag = 'scoped memory for tpu_custom_call.1']
    #allocation5 [shape = 's32[1]{0}', space=sflag, size = 0x4, scoped, tag = 'scoped memory for tpu_custom_call.1']
    #allocation6 [shape = 'u8[16384]{0}', space=vmem, size = 0x4000, scoped, tag = 'input window, operand 1, single buffered']
    #allocation7 [shape = 's32[1]{0}', space=sflag, size = 0x4, scoped, tag = 'scoped memory for tpu_custom_call.1']
    #allocation8 [shape = 'u8[8192]{0}', space=vmem, size = 0x2000, scoped, tag = 'output window, operand 0, single buffered']
    %8 = vsyncpa [#allocation4], 0
    %9 = vsyncpa [#allocation7], 0
    %10 = vsyncpa [#allocation5], 0
    // Predicated region
    $region2: #{tpu_custom_call.1} parent=1 // pred_check
      _
    $region3: #{tpu_custom_call.1} parent=1 // pred_check_branch
      %12 = sbr.rel (0) target = $region5
    $region4: #{tpu_custom_call.1} parent=1 // pred_region
      %14 = vsyncadd [#allocation4], 0
      %s15 = sshll.u32 %s0, 4
      %s16 = int_to_ptr.hbm [resolvable:$true] %s15
      %s17 = sshll.u32 [#allocation3], 4
      %s18 = int_to_ptr.vmem [resolvable:$true] %s17
      %23 = dma.hbm_to_vmem [thread:$0]  %s16, 256, %s18, [#allocation4], 64, 64, 4
    $region5: #{tpu_custom_call.1} parent=1 // pred_fallthru
      _
    // Predicated region
    $region6: #{tpu_custom_call.1} parent=1 // pred_check
      _
    $region7: #{tpu_custom_call.1} parent=1 // pred_check_branch
      %25 = sbr.rel (0) target = $region9
    $region8: #{tpu_custom_call.1} parent=1 // pred_region
      %27 = vsyncadd [#allocation7], 0
      %s28 = sshll.u32 %s1, 4
      %s29 = int_to_ptr.hbm [resolvable:$true] %s28
      %s30 = sshll.u32 [#allocation6], 4
      %s31 = int_to_ptr.vmem [resolvable:$true] %s30
      %36 = dma.hbm_to_vmem [thread:$0]  %s29, 512, %s31, [#allocation7], 64, 64, 4
    $region9: #{tpu_custom_call.1} parent=1 // pred_fallthru
      _
    // Predicated region
    $region10: #{tpu_custom_call.1} parent=1 // pred_check
      _
    $region11: #{tpu_custom_call.1} parent=1 // pred_check_branch
      %38 = sbr.rel (0) target = $region13
    $region12: #{tpu_custom_call.1} parent=1 // pred_region
      _
    $region13: #{tpu_custom_call.1} parent=1 // pred_fallthru
      _
    // Predicated region
    $region14: #{tpu_custom_call.1} parent=1 // pred_check
      _
    $region15: #{tpu_custom_call.1} parent=1 // pred_check_branch
      %40 = sbr.rel (0) target = $region17
    $region16: #{tpu_custom_call.1} parent=1 // pred_region
      %42 = dma.done [#allocation4], 256
    $region17: #{tpu_custom_call.1} parent=1 // pred_fallthru
      _
    // Predicated region
    $region18: #{tpu_custom_call.1} parent=1 // pred_check
      _
    $region19: #{tpu_custom_call.1} parent=1 // pred_check_branch
      %44 = sbr.rel (0) target = $region21
    $region20: #{tpu_custom_call.1} parent=1 // pred_region
      %46 = dma.done [#allocation7], 512
    $region21: #{tpu_custom_call.1} parent=1 // pred_fallthru
      _
    %p48 = scmp.eq.s32.totalorder 0, 0
    // Predicated region
    $region22: #{tpu_custom_call.1} parent=1 // pred_check
      %p49 = pneg %p48
    $region23: #{tpu_custom_call.1} parent=1 // pred_check_branch
      %51 = sbr.rel (%p49) target = $region25
    $region24: #{tpu_custom_call.1} parent=1 // pred_region
      %vm52 = vcmask 523264
      %53 = vst.msk [vmem:[#allocation2] sm:$0xff] %vm52, 0.0
      %54 = vst.msk [vmem:[#allocation2 + $0x8] sm:$0xff] %vm52, 0.0
      %55 = vst.msk [vmem:[#allocation2 + $0x10] sm:$0xff] %vm52, 0.0
      %56 = vst.msk [vmem:[#allocation2 + $0x18] sm:$0xff] %vm52, 0.0
    $region25: #{tpu_custom_call.1} parent=1 // pred_fallthru
      _
    %v57 = vld [vmem:[#allocation2] sm:$0xff]
    %v58 = vld [vmem:[#allocation2 + $0x8] sm:$0xff]
    %v59 = vld [vmem:[#allocation2 + $0x10] sm:$0xff]
    %v60 = vld [vmem:[#allocation2 + $0x18] sm:$0xff]
    %v61 = vld [vmem:[#allocation3] sm:$0xf]
    %v62 = vld [vmem:[#allocation3 + $0x4] sm:$0xf]
    %v63 = vld [vmem:[#allocation3 + $0x8] sm:$0xf]
    %v64 = vld [vmem:[#allocation3 + $0xc] sm:$0xf]
    %v65 = vld [vmem:[#allocation6] sm:$0xf]
    %v66 = vld [vmem:[#allocation6 + $0x4] sm:$0xf]
    %v67 = vld [vmem:[#allocation6 + $0x8] sm:$0xf]
    %v68 = vld [vmem:[#allocation6 + $0xc] sm:$0xf]
    %v69 = vld [vmem:[#allocation6 + $0x10] sm:$0xf]
    %v70 = vld [vmem:[#allocation6 + $0x14] sm:$0xf]
    %v71 = vld [vmem:[#allocation6 + $0x18] sm:$0xf]
    %v72 = vld [vmem:[#allocation6 + $0x1c] sm:$0xf]
    %v77 = vunpack.c.l.b16 %v61
    %v78 = vunpack.c.l.b16 %v62
    %v79 = vunpack.c.l.b16 %v63
    %v80 = vunpack.c.l.b16 %v64
    %v81 = vpack.c.b16 %v78, %v77
    %v82 = vpack.c.b16 %v80, %v79
    %v91 = vunpack.c.l.b16 %v65
    %v92 = vunpack.c.l.b16 %v66
    %v93 = vunpack.c.l.b16 %v67
    %v94 = vunpack.c.l.b16 %v68
    %v95 = vunpack.c.l.b16 %v69
    %v96 = vunpack.c.l.b16 %v70
    %v97 = vunpack.c.l.b16 %v71
    %v98 = vunpack.c.l.b16 %v72
    %v99 = vpack.c.b16 %v92, %v91
    %v100 = vpack.c.b16 %v94, %v93
    %v101 = vpack.c.b16 %v96, %v95
    %v102 = vpack.c.b16 %v98, %v97
    %vm107 = vcmask 523264
    %v109 = vsel %vm107, %v81, 0
    %v112 = vsel %vm107, %v82, 0
    %114 = vmatpush.bf16.msra.mxu0 0
    %115 = vmatpush.bf16.msra.mxu0 0
    %116 = vmatpush.bf16.msra.mxu0 0
    %117 = vmatpush.bf16.msra.mxu0 0
    %118 = vmatpush.bf16.msra.mxu0 %v102
    %119 = vmatpush.bf16.msra.mxu0 %v101
    %120 = vmatpush.bf16.msra.mxu0 %v100
    %121 = vmatpush.bf16.msra.mxu0 %v99
    %122 = vmatmul.bf16.gmra.mxu0 %v109
    %v123 = vpop.f32.mrf.mxu0
    %v124 = vadd.f32 0.0, %v123
    %v125 = vpop.f32.mrf.mxu0
    %v126 = vadd.f32 0.0, %v125
    %127 = vmatmul.bf16.gmra.mxu0 %v112
    %v128 = vpop.f32.mrf.mxu0
    %v129 = vadd.f32 0.0, %v128
    %v130 = vpop.f32.mrf.mxu0
    %v131 = vadd.f32 0.0, %v130
    %132 = vdwg.mxu0
    %v133 = vadd.f32 %v57, %v124
    %v134 = vadd.f32 %v58, %v126
    %v135 = vadd.f32 %v59, %v129
    %v136 = vadd.f32 %v60, %v131
    %137 = vst.msk [vmem:[#allocation2] sm:$0xff] %vm107, %v133
    %138 = vst.msk [vmem:[#allocation2 + $0x8] sm:$0xff] %vm107, %v134
    %139 = vst.msk [vmem:[#allocation2 + $0x10] sm:$0xff] %vm107, %v135
    %140 = vst.msk [vmem:[#allocation2 + $0x18] sm:$0xff] %vm107, %v136
    // Predicated region
    $region26: #{tpu_custom_call.1} parent=1 // pred_check
      %p141 = pneg %p48
    $region27: #{tpu_custom_call.1} parent=1 // pred_check_branch
      %143 = sbr.rel (%p141) target = $region29
    $region28: #{tpu_custom_call.1} parent=1 // pred_region
      %v144 = vld [vmem:[#allocation2] sm:$0xff]
      %v145 = vld [vmem:[#allocation2 + $0x8] sm:$0xff]
      %v146 = vld [vmem:[#allocation2 + $0x10] sm:$0xff]
      %v147 = vld [vmem:[#allocation2 + $0x18] sm:$0xff]
      %v148 = vld [vmem:[%s2] sm:$0x1]
      %v150 = vperm.slane %v148, 0
      %v152 = vadd.f32 %v144, %v150
      %v153 = vadd.f32 %v145, %v150
      %v154 = vadd.f32 %v146, %v150
      %v155 = vadd.f32 %v147, %v150
      %v156 = vpack.c.bf16 %v152, %v152
      %v157 = vpack.c.bf16 %v153, %v153
      %v158 = vpack.c.bf16 %v154, %v154
      %v159 = vpack.c.bf16 %v155, %v155
      %vm160 = vcmask 519168
      %161 = vst.msk [vmem:[#allocation8] sm:$0xf] %vm160, %v156
      %162 = vst.msk [vmem:[#allocation8 + $0x4] sm:$0xf] %vm160, %v157
      %163 = vst.msk [vmem:[#allocation8 + $0x8] sm:$0xf] %vm160, %v158
      %164 = vst.msk [vmem:[#allocation8 + $0xc] sm:$0xf] %vm160, %v159
    $region29: #{tpu_custom_call.1} parent=1 // pred_fallthru
      _
    // Predicated region
    $region30: #{tpu_custom_call.1} parent=1 // pred_check
      _
    $region31: #{tpu_custom_call.1} parent=1 // pred_check_branch
      %166 = sbr.rel (0) target = $region33
    $region32: #{tpu_custom_call.1} parent=1 // pred_region
      %168 = vsyncadd [#allocation5], 0
      %s169 = sshll.u32 [#allocation8], 4
      %s170 = int_to_ptr.vmem [resolvable:$true] %s169
      %s171 = sshll.u32 %s3, 4
      %s172 = int_to_ptr.hbm [resolvable:$true] %s171
      %177 = dma.vmem_to_hbm [thread:$0]  %s170, 256, %s172, [#allocation5], 64, 64, 4
    $region33: #{tpu_custom_call.1} parent=1 // pred_fallthru
      _
    // Predicated region
    $region34: #{tpu_custom_call.1} parent=1 // pred_check
      _
    $region35: #{tpu_custom_call.1} parent=1 // pred_check_branch
      %179 = sbr.rel (0) target = $region37
    $region36: #{tpu_custom_call.1} parent=1 // pred_region
      %181 = dma.done [#allocation5], 256
    $region37: #{tpu_custom_call.1} parent=1 // pred_fallthru
      _
    %182 = vsyncpa [#allocation4], 1
    %183 = vsyncpa [#allocation7], 1
    %184 = vsyncpa [#allocation5], 1

</llo_original>
